<compile_context>
chip_gen: v7x
topology: tpu7x:2x2x1
jax: 0.10.0
libtpu: 0.0.40
codegen_flags: <defaults>
</compile_context>

<pallas_src>
import jax
import jax.numpy as jnp
from jax.experimental import pallas as pl
from jax.experimental.pallas import tpu as pltpu

LANE = 128


def _round_up(x, m):
    return ((x + m - 1) // m) * m


def _cdiv(a, b):
    return (a + b - 1) // b


def critic_kernel(x_ref, w1_ref, b1_ref, w2_ref, b2_ref, w3_ref, b3_ref, o_ref):
    """One batch tile of the 3-layer value MLP.

    x_ref  : (TB, D)      streamed per grid step (double-buffered)
    w1_ref : (D, H)       resident across grid steps (constant index_map)
    b1_ref : (1, H)
    w2_ref : (H, H)
    b2_ref : (1, H)
    w3_ref : (1, H)       final layer as a row vector (VPU/XLU, not MXU)
    b3_ref : (1,)         SMEM scalar
    o_ref  : (1, 1, TB)   lane-dense output row for this tile
    """
    # Layer 1: Linear(D -> H) + ReLU.  MXU matmul, f32 accumulation;
    # bias add / ReLU stay in f32 regardless of the MXU input dtype.
    h1 = jnp.dot(x_ref[...], w1_ref[...], preferred_element_type=jnp.float32)
    h1 = jnp.maximum(h1 + b1_ref[...], 0.0)

    # Layer 2: Linear(H -> H) + ReLU (dominant matmul; bf16 inputs by default).
    h2 = jnp.dot(h1.astype(w2_ref.dtype), w2_ref[...],
                 preferred_element_type=jnp.float32)
    h2 = jnp.maximum(h2 + b2_ref[...], 0.0)

    # Layer 3: Linear(H -> 1).  N=1 matmul wastes the MXU; do a VPU multiply
    # + lane reduction instead.  The (TB,) -> (1,1,TB) relayout rides the
    # otherwise-idle XLU slot and gives a lane-dense, unmasked store.
    v = jnp.sum(h2 * w3_ref[...], axis=-1)            # (TB,), f32
    o_ref[...] = (v + b3_ref[0]).reshape(1, 1, -1).astype(o_ref.dtype)


def critic_forward(state, params, *, batch_tile=2048,
                   compute_dtype=jnp.bfloat16):
    """Fused critic forward pass.  `params` comes from prepare_params().

    compute_dtype controls only the MXU-input dtype of state/w1/w2; all
    accumulation, bias math, ReLU and the final projection stay f32.  Use
    compute_dtype=jnp.float32 for exact parity with the PyTorch module.
    """
    w1, b1, w2, b2, w3, b3 = params
    batch, input_dims = state.shape
    hidden = w1.shape[1]

    # Degenerate tiny batches: pad to one 8-row sublane tile (negligible).
    rows = batch
    if rows < 8:
        state = jnp.pad(state, ((0, 8 - rows), (0, 0)))
        rows = 8

    # --- batch tiling: big multiple-of-8 tiles, NO host-side padding --------
    tb = max(8, min(_round_up(batch_tile, 8), _round_up(rows, 8)))
    num_tiles = _cdiv(rows, tb)
    # v7x has 2 TensorCores: with >1 grid step prefer an even step count so
    # the "parallel" batch axis shards evenly across both cores (best effort).
    if num_tiles > 1 and num_tiles % 2 == 1:
        tb_even = max(8, _round_up(_cdiv(rows, num_tiles + 1), 8))
        if _cdiv(rows, tb_even) % 2 == 0:
            tb = tb_even
            num_tiles = _cdiv(rows, tb)
    grid = (num_tiles,)

    # --- bf16 MXU inputs by default (f32 accumulation in-kernel) ------------
    if compute_dtype != jnp.float32:
        state = state.astype(compute_dtype)
        w1 = w1.astype(compute_dtype)
        w2 = w2.astype(compute_dtype)
    csz = jnp.dtype(compute_dtype).itemsize

    in_specs = [
        # state: one (tb, D) tile per grid step -> pipelined HBM stream.
        # The last block may be partial; garbage rows are sliced off below.
        pl.BlockSpec((tb, input_dims), lambda i: (i, 0)),
        # weights / biases: constant index_map -> DMA'd once, stay resident.
        pl.BlockSpec((input_dims, hidden), lambda i: (0, 0)),
        pl.BlockSpec((1, hidden), lambda i: (0, 0)),
        pl.BlockSpec((hidden, hidden), lambda i: (0, 0)),
        pl.BlockSpec((1, hidden), lambda i: (0, 0)),
        pl.BlockSpec((1, hidden), lambda i: (0, 0)),
        # b3 is a single scalar: keep it in SMEM, not a padded VMEM tile.
        pl.BlockSpec(memory_space=pltpu.MemorySpace.SMEM),
    ]
    # Lane-dense output slab: (num_tiles, 1, tb) with one full (1, 1, tb) row
    # per step -> unmasked vector stores, no (tb, 1) column writeback.
    out_specs = pl.BlockSpec((1, 1, tb), lambda i: (i, 0, 0))
    out_shape = jax.ShapeDtypeStruct((num_tiles, 1, tb), jnp.float32)

    # Rough per-step VMEM footprint: double-buffered state + output, resident
    # weights, f32 h1/h2/temp.  Only raise the scoped-VMEM limit if needed.
    est = (2 * tb * input_dims * csz
           + 2 * tb * 4
           + (input_dims * hidden + hidden * hidden) * csz + 4 * 4 * hidden
           + 3 * tb * hidden * 4)
    vmem_limit = None if est <= (28 << 20) else int(min(est * 3 // 2, 96 << 20))

    out = pl.pallas_call(
        critic_kernel,
        out_shape=out_shape,
        grid=grid,
        in_specs=in_specs,
        out_specs=out_specs,
        compiler_params=pltpu.CompilerParams(
            dimension_semantics=("parallel",),
            vmem_limit_bytes=vmem_limit),
    )(state, w1, b1, w2, b2, w3, b3)

    # (num_tiles, 1, tb) -> (batch, 1); trailing garbage rows discarded.
    return out.reshape(-1)[:batch].reshape(batch, 1)


def init_critic_params(key, input_dims, hidden_size):
    """PyTorch nn.Linear-style init (uniform +-1/sqrt(fan_in)).

    Weights are returned as (in, out) for the x @ W convention (PyTorch
    stores (out, in); this is the pre-transposed equivalent).
    """
    ks = jax.random.split(key, 6)

    def linear(kw, kb, fan_in, fan_out):
        bound = 1.0 / jnp.sqrt(fan_in)
        w = jax.random.uniform(kw, (fan_in, fan_out), jnp.float32, -bound, bound)
        b = jax.random.uniform(kb, (fan_out,), jnp.float32, -bound, bound)
        return w, b

    w1, b1 = linear(ks[0], ks[1], input_dims, hidden_size)
    w2, b2 = linear(ks[2], ks[3], hidden_size, hidden_size)
    w3, b3 = linear(ks[4], ks[5], hidden_size, 1)
    return (w1, b1, w2, b2, w3, b3)


def prepare_params(raw_params, lane=LANE):
    """Zero-pad hidden to a lane multiple (128) and reshape for the kernel.

    Padding is numerically exact: padded hidden units get zero weights and
    zero bias, ReLU keeps them at 0, and they contribute nothing downstream.
    (Do NOT over-pad to 256: a 128-wide layer still costs one MXU pass.)
    """
    w1, b1, w2, b2, w3, b3 = raw_params
    hidden = w1.shape[1]
    hp = _round_up(hidden, lane)
    p = hp - hidden
    if p:
        w1 = jnp.pad(w1, ((0, 0), (0, p)))
        b1 = jnp.pad(b1, ((0, p),))
        w2 = jnp.pad(w2, ((0, p), (0, p)))
        b2 = jnp.pad(b2, ((0, p),))
        w3 = jnp.pad(w3, ((0, p), (0, 0)))
    return (w1, b1.reshape(1, hp), w2, b2.reshape(1, hp),
            w3.reshape(1, hp), b3.reshape(1))


def critic_reference(state, raw_params):
    """Pure-JAX reference matching the PyTorch forward pass (f32)."""
    w1, b1, w2, b2, w3, b3 = raw_params
    h = jnp.maximum(state @ w1 + b1, 0.0)
    h = jnp.maximum(h @ w2 + b2, 0.0)
    return h @ w3 + b3


if __name__ == "__main__":
    key = jax.random.PRNGKey(0)
    k_state, k_params, k_state2 = jax.random.split(key, 3)

    input_dims = 16
    hidden_size = 32   # module default is 256; kernel pads hidden to 128 lanes

    raw_params = init_critic_params(k_params, input_dims, hidden_size)
    params = prepare_params(raw_params)

    # 1) Exact f32 path, single grid step.
    batch = 8
    state = jax.random.normal(k_state, (batch, input_dims), dtype=jnp.float32)
    value = jax.block_until_ready(
        critic_forward(state, params, compute_dtype=jnp.float32))
    ref = critic_reference(state, raw_params)
    assert value.shape == (batch, 1)
    assert jnp.allclose(value, ref, atol=1e-5, rtol=1e-5)

    # 2) Exact f32 path, multi-step parallel grid with a PARTIAL last tile
    #    (no host-side padding: 200 rows, 64-row tiles -> 4 steps, last=8 rows).
    batch2 = 200
    state2 = jax.random.normal(k_state2, (batch2, input_dims), dtype=jnp.float32)
    value2 = jax.block_until_ready(
        critic_forward(state2, params, batch_tile=64,
                       compute_dtype=jnp.float32))
    ref2 = critic_reference(state2, raw_params)
    assert value2.shape == (batch2, 1)
    assert jnp.allclose(value2, ref2, atol=1e-5, rtol=1e-5)

    # 3) Default bf16-MXU-input path (f32 accumulation); loose tolerance is
    #    expected and fine for a critic value head.
    value_bf16 = jax.block_until_ready(
        critic_forward(state2, params, batch_tile=64))
    assert value_bf16.shape == (batch2, 1)
    assert jnp.allclose(value_bf16, ref2, atol=5e-2, rtol=5e-2)

    print("KERNEL_OK")
</pallas_src>

<mosaic_0001>
module attributes {stable_mosaic.version = 11 : i64} {
  func.func @critic_kernel(%arg0: i32, %arg1: memref<8x16xf32, #tpu.memory_space<vmem>>, %arg2: memref<16x128xf32, #tpu.memory_space<vmem>>, %arg3: memref<1x128xf32, #tpu.memory_space<vmem>>, %arg4: memref<128x128xf32, #tpu.memory_space<vmem>>, %arg5: memref<1x128xf32, #tpu.memory_space<vmem>>, %arg6: memref<1x128xf32, #tpu.memory_space<vmem>>, %arg7: memref<1xf32, #tpu.memory_space<smem>>, %arg8: memref<1x1x8xf32, #tpu.memory_space<vmem>>) attributes {dimension_semantics = [#tpu.dimension_semantics<parallel>], iteration_bounds = array<i64: 1>, scalar_prefetch = 0 : i64, scratch_operands = 0 : i64, tpu.core_type = #tpu.core_type<tc>, window_params = [{transform_indices = @transform_0, window_bounds = array<i64: 8, 16>}, {pipeline_mode = #tpu.pipeline_mode<synchronous>, transform_indices = @transform_1, window_bounds = array<i64: 16, 128>}, {pipeline_mode = #tpu.pipeline_mode<synchronous>, transform_indices = @transform_2, window_bounds = array<i64: 1, 128>}, {pipeline_mode = #tpu.pipeline_mode<synchronous>, transform_indices = @transform_3, window_bounds = array<i64: 128, 128>}, {pipeline_mode = #tpu.pipeline_mode<synchronous>, transform_indices = @transform_4, window_bounds = array<i64: 1, 128>}, {pipeline_mode = #tpu.pipeline_mode<synchronous>, transform_indices = @transform_5, window_bounds = array<i64: 1, 128>}, {transform_indices = @transform_6, window_bounds = array<i64: 1>}, {transform_indices = @transform_7, window_bounds = array<i64: 1, 1, 8>}]} {
    %c0 = arith.constant 0 : index
    %c0_0 = arith.constant 0 : index
    %0 = vector.load %arg1[%c0, %c0_0] : memref<8x16xf32, #tpu.memory_space<vmem>>, vector<8x16xf32>
    %c0_1 = arith.constant 0 : index
    %c0_2 = arith.constant 0 : index
    %1 = vector.load %arg2[%c0_1, %c0_2] : memref<16x128xf32, #tpu.memory_space<vmem>>, vector<16x128xf32>
    %cst = arith.constant dense<0.000000e+00> : vector<8x128xf32>
    %2 = tpu.matmul %0, %1, %cst {dimension_numbers = #tpu.dot_dimension_numbers<[1], [0], [0], [1], [0, 0, 1, 1], [], []>} : vector<8x16xf32>, vector<16x128xf32>, vector<8x128xf32> -> vector<8x128xf32>
    %c0_3 = arith.constant 0 : index
    %c0_4 = arith.constant 0 : index
    %3 = vector.load %arg3[%c0_3, %c0_4] : memref<1x128xf32, #tpu.memory_space<vmem>>, vector<1x128xf32>
    %4 = vector.broadcast %3 : vector<1x128xf32> to vector<8x128xf32>
    %5 = arith.addf %2, %4 : vector<8x128xf32>
    %cst_5 = arith.constant 0.000000e+00 : f32
    %6 = vector.broadcast %cst_5 : f32 to vector<8x128xf32>
    %7 = arith.maximumf %5, %6 : vector<8x128xf32>
    %c0_6 = arith.constant 0 : index
    %c0_7 = arith.constant 0 : index
    %8 = vector.load %arg4[%c0_6, %c0_7] : memref<128x128xf32, #tpu.memory_space<vmem>>, vector<128x128xf32>
    %cst_8 = arith.constant dense<0.000000e+00> : vector<8x128xf32>
    %9 = tpu.matmul %7, %8, %cst_8 {dimension_numbers = #tpu.dot_dimension_numbers<[1], [0], [0], [1], [0, 0, 1, 1], [], []>} : vector<8x128xf32>, vector<128x128xf32>, vector<8x128xf32> -> vector<8x128xf32>
    %c0_9 = arith.constant 0 : index
    %c0_10 = arith.constant 0 : index
    %10 = vector.load %arg5[%c0_9, %c0_10] : memref<1x128xf32, #tpu.memory_space<vmem>>, vector<1x128xf32>
    %11 = vector.broadcast %10 : vector<1x128xf32> to vector<8x128xf32>
    %12 = arith.addf %9, %11 : vector<8x128xf32>
    %cst_11 = arith.constant 0.000000e+00 : f32
    %13 = vector.broadcast %cst_11 : f32 to vector<8x128xf32>
    %14 = arith.maximumf %12, %13 : vector<8x128xf32>
    %c0_12 = arith.constant 0 : index
    %c0_13 = arith.constant 0 : index
    %15 = vector.load %arg6[%c0_12, %c0_13] : memref<1x128xf32, #tpu.memory_space<vmem>>, vector<1x128xf32>
    %16 = vector.broadcast %15 : vector<1x128xf32> to vector<8x128xf32>
    %17 = arith.mulf %14, %16 : vector<8x128xf32>
    %cst_14 = arith.constant dense<0.000000e+00> : vector<8xf32>
    %18 = vector.multi_reduction <add>, %17, %cst_14 [1] : vector<8x128xf32> to vector<8xf32>
    %c0_15 = arith.constant 0 : index
    %19 = memref.load %arg7[%c0_15] : memref<1xf32, #tpu.memory_space<smem>>
    %20 = vector.broadcast %19 : f32 to vector<8xf32>
    %21 = arith.addf %18, %20 : vector<8xf32>
    %22 = vector.shape_cast %21 : vector<8xf32> to vector<1x1x8xf32>
    %c0_16 = arith.constant 0 : index
    %c0_17 = arith.constant 0 : index
    %c0_18 = arith.constant 0 : index
    %23 = vector.load %arg8[%c0_16, %c0_17, %c0_18] : memref<1x1x8xf32, #tpu.memory_space<vmem>>, vector<1x1x8xf32>
    tpu.vector_store %arg8[%c0_16, %c0_17, %c0_18], %22 {strides = array<i32>} : memref<1x1x8xf32, #tpu.memory_space<vmem>>, vector<1x1x8xf32>,
    return
  }
  func.func @transform_0(%arg0: i32) -> (i32, i32) {
    %c0_i32 = arith.constant 0 : i32
    %c0_i32_0 = arith.constant 0 : i32
    return %arg0, %c0_i32 : i32, i32
  }
  func.func @transform_1(%arg0: i32) -> (i32, i32) {
    %c0_i32 = arith.constant 0 : i32
    %c0_i32_0 = arith.constant 0 : i32
    %c0_i32_1 = arith.constant 0 : i32
    return %c0_i32, %c0_i32_0 : i32, i32
  }
  func.func @transform_2(%arg0: i32) -> (i32, i32) {
    %c0_i32 = arith.constant 0 : i32
    %c0_i32_0 = arith.constant 0 : i32
    %c0_i32_1 = arith.constant 0 : i32
    return %c0_i32, %c0_i32_0 : i32, i32
  }
  func.func @transform_3(%arg0: i32) -> (i32, i32) {
    %c0_i32 = arith.constant 0 : i32
    %c0_i32_0 = arith.constant 0 : i32
    %c0_i32_1 = arith.constant 0 : i32
    return %c0_i32, %c0_i32_0 : i32, i32
  }
  func.func @transform_4(%arg0: i32) -> (i32, i32) {
    %c0_i32 = arith.constant 0 : i32
    %c0_i32_0 = arith.constant 0 : i32
    %c0_i32_1 = arith.constant 0 : i32
    return %c0_i32, %c0_i32_0 : i32, i32
  }
  func.func @transform_5(%arg0: i32) -> (i32, i32) {
    %c0_i32 = arith.constant 0 : i32
    %c0_i32_0 = arith.constant 0 : i32
    %c0_i32_1 = arith.constant 0 : i32
    return %c0_i32, %c0_i32_0 : i32, i32
  }
  func.func @transform_6(%arg0: i32) -> i32 {
    %c0_i32 = arith.constant 0 : i32
    %c0_i32_0 = arith.constant 0 : i32
    return %c0_i32 : i32
  }
  func.func @transform_7(%arg0: i32) -> (i32, i32, i32) {
    %c0_i32 = arith.constant 0 : i32
    %c0_i32_0 = arith.constant 0 : i32
    %c0_i32_1 = arith.constant 0 : i32
    return %arg0, %c0_i32, %c0_i32_0 : i32, i32, i32
  }
}

</mosaic_0001>

<llo_original>
// kernel: tpu_custom_call.1
$region0: #{tpu_custom_call.1}
  #allocation0 [shape = 'u32[]', space=smem, size = 0x4, offset = 0x4, fixed_abs, tag = 'smem constant byte address 0x4 - core index']
  #allocation1 [shape = 'u32[144,128]{1,0:T(1,128)}', space=vmem, size = 0x12000, scoped, tag = 'internal scratch']
  #allocation2 [shape = 'f32[1]{0:T(128)S(6)}', space=smem, size = 0x200, scoped, tag = 'scoped memory for tpu_custom_call.1']
  %s0 = inlined_call_operand.hbm [shape: f32[8,16], index: 0, kind: input, shape index: {}]
  %s1 = inlined_call_operand.hbm [shape: f32[16,128], index: 1, kind: input, shape index: {}]
  %s2 = inlined_call_operand.vmem [shape: f32[1,128], index: 2, kind: input, shape index: {}]
  %s3 = inlined_call_operand.hbm [shape: f32[128,128], index: 3, kind: input, shape index: {}]
  %s4 = inlined_call_operand.vmem [shape: f32[1,128], index: 4, kind: input, shape index: {}]
  %s5 = inlined_call_operand.vmem [shape: f32[1,128], index: 5, kind: input, shape index: {}]
  %s6 = inlined_call_operand.<no memory space> [shape: f32[1], index: 6, kind: input, shape index: {}]
  %s7 = inlined_call_operand.hbm [shape: f32[1,1,8], index: 7, kind: output, shape index: {}]
  %s8 = sld [smem:[#allocation0]]
  $region50: #{tpu_custom_call.1} parent=0
    _
  %s10 = ssub.s32 1, %s8
  %s11 = scalar_select 0, %s10, %s8
  %12 = sst [smem:[#allocation2]] %s6
  $region1: #{tpu_custom_call.1} parent=0
    #allocation3 [shape = 'u8[4096]{0}', space=vmem, size = 0x1000, scoped, tag = 'input window, operand 0, single buffered']
    #allocation4 [shape = 's32[1]{0}', space=sflag, size = 0x4, scoped, tag = 'scoped memory for tpu_custom_call.1']
    #allocation5 [shape = 's32[1]{0}', space=sflag, size = 0x4, scoped, tag = 'scoped memory for tpu_custom_call.1']
    #allocation6 [shape = 'u8[8192]{0}', space=vmem, size = 0x2000, scoped, tag = 'input window, operand 1, single buffered']
    #allocation7 [shape = 's32[1]{0}', space=sflag, size = 0x4, scoped, tag = 'scoped memory for tpu_custom_call.1']
    #allocation8 [shape = 'u8[65536]{0}', space=vmem, size = 0x10000, scoped, tag = 'input window, operand 3, single buffered']
    #allocation9 [shape = 'u8[512]{0}', space=vmem, size = 0x400, scoped, tag = 'output window, operand 0, single buffered']
    %13 = vsyncpa [#allocation4], 0
    %14 = vsyncpa [#allocation7], 0
    %15 = vsyncpa [#allocation5], 0
    // Predicated region
    $region2: #{tpu_custom_call.1} parent=1 // pred_check
      _
    $region3: #{tpu_custom_call.1} parent=1 // pred_check_branch
      %17 = sbr.rel (0) target = $region5
    $region4: #{tpu_custom_call.1} parent=1 // pred_region
      %s19 = ssub.s32 128, 128
      %20 = vsyncadd [#allocation4], %s19
      %s22 = sshll.u32 [#allocation3], 4
      %s23 = int_to_ptr.vmem [resolvable:$true] %s22
      %25 = dma.hbm_to_vmem [thread:$0]  %s0, 128, %s23, [#allocation4]
    $region5: #{tpu_custom_call.1} parent=1 // pred_fallthru
      _
    // Predicated region
    $region6: #{tpu_custom_call.1} parent=1 // pred_check
      _
    $region7: #{tpu_custom_call.1} parent=1 // pred_check_branch
      %27 = sbr.rel (0) target = $region9
    $region8: #{tpu_custom_call.1} parent=1 // pred_region
      %s29 = ssub.s32 256, 256
      %30 = vsyncadd [#allocation7], %s29
      %s31 = sshll.u32 [#allocation6], 4
      %s32 = int_to_ptr.vmem [resolvable:$true] %s31
      %37 = dma.hbm_to_vmem [thread:$0]  %s1, 256, %s32, [#allocation7], 128, 128, 8
    $region9: #{tpu_custom_call.1} parent=1 // pred_fallthru
      _
    // Predicated region
    $region10: #{tpu_custom_call.1} parent=1 // pred_check
      _
    $region11: #{tpu_custom_call.1} parent=1 // pred_check_branch
      %39 = sbr.rel (0) target = $region13
    $region12: #{tpu_custom_call.1} parent=1 // pred_region
      _
    $region13: #{tpu_custom_call.1} parent=1 // pred_fallthru
      _
    // Predicated region
    $region14: #{tpu_custom_call.1} parent=1 // pred_check
      _
    $region15: #{tpu_custom_call.1} parent=1 // pred_check_branch
      %41 = sbr.rel (0) target = $region17
    $region16: #{tpu_custom_call.1} parent=1 // pred_region
      %s43 = ssub.s32 2048, 2048
      %44 = vsyncadd [#allocation7], %s43
      %s45 = sshll.u32 [#allocation8], 4
      %s46 = int_to_ptr.vmem [resolvable:$true] %s45
      %51 = dma.hbm_to_vmem [thread:$0]  %s3, 2048, %s46, [#allocation7], 128, 128, 8
    $region17: #{tpu_custom_call.1} parent=1 // pred_fallthru
      _
    // Predicated region
    $region18: #{tpu_custom_call.1} parent=1 // pred_check
      _
    $region19: #{tpu_custom_call.1} parent=1 // pred_check_branch
      %53 = sbr.rel (0) target = $region21
    $region20: #{tpu_custom_call.1} parent=1 // pred_region
      _
    $region21: #{tpu_custom_call.1} parent=1 // pred_fallthru
      _
    // Predicated region
    $region22: #{tpu_custom_call.1} parent=1 // pred_check
      _
    $region23: #{tpu_custom_call.1} parent=1 // pred_check_branch
      %55 = sbr.rel (0) target = $region25
    $region24: #{tpu_custom_call.1} parent=1 // pred_region
      _
    $region25: #{tpu_custom_call.1} parent=1 // pred_fallthru
      _
    // Predicated region
    $region26: #{tpu_custom_call.1} parent=1 // pred_check
      _
    $region27: #{tpu_custom_call.1} parent=1 // pred_check_branch
      %57 = sbr.rel (0) target = $region29
    $region28: #{tpu_custom_call.1} parent=1 // pred_region
      _
    $region29: #{tpu_custom_call.1} parent=1 // pred_fallthru
      _
    // Predicated region
    $region30: #{tpu_custom_call.1} parent=1 // pred_check
      _
    $region31: #{tpu_custom_call.1} parent=1 // pred_check_branch
      %59 = sbr.rel (0) target = $region33
    $region32: #{tpu_custom_call.1} parent=1 // pred_region
      %60 = dma.done [#allocation4], 128
    $region33: #{tpu_custom_call.1} parent=1 // pred_fallthru
      _
    // Predicated region
    $region34: #{tpu_custom_call.1} parent=1 // pred_check
      _
    $region35: #{tpu_custom_call.1} parent=1 // pred_check_branch
      %62 = sbr.rel (0) target = $region37
    $region36: #{tpu_custom_call.1} parent=1 // pred_region
      %63 = dma.done [#allocation7], 256
    $region37: #{tpu_custom_call.1} parent=1 // pred_fallthru
      _
    // Predicated region
    $region38: #{tpu_custom_call.1} parent=1 // pred_check
      _
    $region39: #{tpu_custom_call.1} parent=1 // pred_check_branch
      %65 = sbr.rel (0) target = $region41
    $region40: #{tpu_custom_call.1} parent=1 // pred_region
      %66 = dma.done [#allocation7], 2048
    $region41: #{tpu_custom_call.1} parent=1 // pred_fallthru
      _
    %v67 = vld [vmem:[#allocation3] sm:$0xff]
    %v68 = vld [vmem:[#allocation6] sm:$0xff]
    %v69 = vld [vmem:[#allocation6 + $0x8] sm:$0xff]
    %v70 = vld [vmem:[%s2] sm:$0x1]
    %v72 = vlaneseq
    %v73 = vshrl.u32 %v72, 7
    %v74 = vsub.s32 0, %v73
    %v75 = vrot.slane %v70, %v74
    %vm77 = vcmask 130048
    %v79 = vsel %vm77, %v67, 0
    %81 = vmatprep.subr.mxu0 0.0
    %82 = vmatpush1.msra.mxu0 %v68
    %83 = vmatprep.subr.mxu0 0.0
    %84 = vmatpush1.msra.mxu0 %v69
    %85 = vmatprep.subr.mxu0 0.0
    %86 = vmatpush1.msra.mxu0 0.0
    %87 = vmatprep.subr.mxu0 0.0
    %88 = vmatpush1.msra.mxu0 0.0
    %89 = vmatprep.subr.mxu0 0.0
    %90 = vmatpush1.msra.mxu0 0.0
    %91 = vmatprep.subr.mxu0 0.0
    %92 = vmatpush1.msra.mxu0 0.0
    %93 = vmatprep.subr.mxu0 0.0
    %94 = vmatpush1.msra.mxu0 0.0
    %95 = vmatprep.subr.mxu0 0.0
    %96 = vmatpush1.msra.mxu0 0.0
    %97 = vmatprep.subr.mxu0 0.0
    %98 = vmatpush1.msra.mxu0 0.0
    %99 = vmatprep.subr.mxu0 0.0
    %100 = vmatpush1.msra.mxu0 0.0
    %101 = vmatprep.subr.mxu0 0.0
    %102 = vmatpush1.msra.mxu0 0.0
    %103 = vmatprep.subr.mxu0 0.0
    %104 = vmatpush1.msra.mxu0 0.0
    %105 = vmatprep.subr.mxu0 0.0
    %106 = vmatpush1.msra.mxu0 0.0
    %107 = vmatprep.subr.mxu0 0.0
    %108 = vmatpush1.msra.mxu0 0.0
    %109 = vmatprep.subr.mxu0 0.0
    %110 = vmatpush1.msra.mxu0 0.0
    %111 = vmatprep.subr.mxu0 0.0
    %112 = vmatpush1.msra.mxu0 0.0
    %113 = vmatprep.subr.mxu0 0.0
    %114 = vmatpush1.msra.mxu0 0.0
    %115 = vmatprep.subr.mxu0 0.0
    %116 = vmatpush1.msra.mxu0 0.0
    %117 = vmatprep.subr.mxu0 0.0
    %118 = vmatpush1.msra.mxu0 0.0
    %119 = vmatprep.subr.mxu0 0.0
    %120 = vmatpush1.msra.mxu0 0.0
    %121 = vmatprep.subr.mxu0 0.0
    %122 = vmatpush1.msra.mxu0 0.0
    %123 = vmatprep.subr.mxu0 0.0
    %124 = vmatpush1.msra.mxu0 0.0
    %125 = vmatprep.subr.mxu0 0.0
    %126 = vmatpush1.msra.mxu0 0.0
    %127 = vmatprep.subr.mxu0 0.0
    %128 = vmatpush1.msra.mxu0 0.0
    %129 = vmatprep.subr.mxu0 0.0
    %130 = vmatpush1.msra.mxu0 0.0
    %131 = vmatprep.subr.mxu0 0.0
    %132 = vmatpush1.msra.mxu0 0.0
    %133 = vmatprep.subr.mxu0 0.0
    %134 = vmatpush1.msra.mxu0 0.0
    %135 = vmatprep.subr.mxu0 0.0
    %136 = vmatpush1.msra.mxu0 0.0
    %137 = vmatprep.subr.mxu0 0.0
    %138 = vmatpush1.msra.mxu0 0.0
    %139 = vmatprep.subr.mxu0 0.0
    %140 = vmatpush1.msra.mxu0 0.0
    %141 = vmatprep.subr.mxu0 0.0
    %142 = vmatpush1.msra.mxu0 0.0
    %143 = vmatprep.subr.mxu0 0.0
    %144 = vmatpush1.msra.mxu0 0.0
    %145 = vmatprep.mubr.f32.mxu0 0.0
    %146 = vmatmul.mubr.f32.gmra.mrb[0].mxu0 %v79
    %v147 = vpop.f32.mrb[0].mxu0
    %v148 = vadd.f32 %v75, %v147
    %v149 = vpop.f32.mrb[0].mxu0
    %150 = vdwg.mxu0
    %v151 = vmax.f32 %v148, 0.0
    %v152 = vld [vmem:[#allocation8] sm:$0xff]
    %v153 = vld [vmem:[#allocation8 + $0x8] sm:$0xff]
    %v154 = vld [vmem:[#allocation8 + $0x10] sm:$0xff]
    %v155 = vld [vmem:[#allocation8 + $0x18] sm:$0xff]
    %v156 = vld [vmem:[#allocation8 + $0x20] sm:$0xff]
    %v157 = vld [vmem:[#allocation8 + $0x28] sm:$0xff]
    %v158 = vld [vmem:[#allocation8 + $0x30] sm:$0xff]
    %v159 = vld [vmem:[#allocation8 + $0x38] sm:$0xff]
    %v160 = vld [vmem:[#allocation8 + $0x40] sm:$0xff]
    %v161 = vld [vmem:[#allocation8 + $0x48] sm:$0xff]
    %v162 = vld [vmem:[#allocation8 + $0x50] sm:$0xff]
    %v163 = vld [vmem:[#allocation8 + $0x58] sm:$0xff]
    %v164 = vld [vmem:[#allocation8 + $0x60] sm:$0xff]
    %v165 = vld [vmem:[#allocation8 + $0x68] sm:$0xff]
    %v166 = vld [vmem:[#allocation8 + $0x70] sm:$0xff]
    %v167 = vld [vmem:[#allocation8 + $0x78] sm:$0xff]
    %v168 = vld [vmem:[%s4] sm:$0x1]
    %v170 = vlaneseq
    %v171 = vshrl.u32 %v170, 7
    %v172 = vsub.s32 0, %v171
    %v173 = vrot.slane %v168, %v172
    %175 = vmatprep.subr.mxu0 0.0
    %176 = vmatpush1.msra.mxu0 %v152
    %177 = vmatprep.subr.mxu0 0.0
    %178 = vmatpush1.msra.mxu0 %v153
    %179 = vmatprep.subr.mxu0 0.0
    %180 = vmatpush1.msra.mxu0 %v154
    %181 = vmatprep.subr.mxu0 0.0
    %182 = vmatpush1.msra.mxu0 %v155
    %183 = vmatprep.subr.mxu0 0.0
    %184 = vmatpush1.msra.mxu0 %v156
    %185 = vmatprep.subr.mxu0 0.0
    %186 = vmatpush1.msra.mxu0 %v157
    %187 = vmatprep.subr.mxu0 0.0
    %188 = vmatpush1.msra.mxu0 %v158
    %189 = vmatprep.subr.mxu0 0.0
    %190 = vmatpush1.msra.mxu0 %v159
    %191 = vmatprep.subr.mxu0 0.0
    %192 = vmatpush1.msra.mxu0 %v160
    %193 = vmatprep.subr.mxu0 0.0
    %194 = vmatpush1.msra.mxu0 %v161
    %195 = vmatprep.subr.mxu0 0.0
    %196 = vmatpush1.msra.mxu0 %v162
    %197 = vmatprep.subr.mxu0 0.0
    %198 = vmatpush1.msra.mxu0 %v163
    %199 = vmatprep.subr.mxu0 0.0
    %200 = vmatpush1.msra.mxu0 %v164
    %201 = vmatprep.subr.mxu0 0.0
    %202 = vmatpush1.msra.mxu0 %v165
    %203 = vmatprep.subr.mxu0 0.0
    %204 = vmatpush1.msra.mxu0 %v166
    %205 = vmatprep.subr.mxu0 0.0
    %206 = vmatpush1.msra.mxu0 %v167
    %207 = vmatprep.subr.mxu0 0.0
    %208 = vmatpush1.msra.mxu0 0.0
    %209 = vmatprep.subr.mxu0 0.0
    %210 = vmatpush1.msra.mxu0 0.0
    %211 = vmatprep.subr.mxu0 0.0
    %212 = vmatpush1.msra.mxu0 0.0
    %213 = vmatprep.subr.mxu0 0.0
    %214 = vmatpush1.msra.mxu0 0.0
    %215 = vmatprep.subr.mxu0 0.0
    %216 = vmatpush1.msra.mxu0 0.0
    %217 = vmatprep.subr.mxu0 0.0
    %218 = vmatpush1.msra.mxu0 0.0
    %219 = vmatprep.subr.mxu0 0.0
    %220 = vmatpush1.msra.mxu0 0.0
    %221 = vmatprep.subr.mxu0 0.0
    %222 = vmatpush1.msra.mxu0 0.0
    %223 = vmatprep.subr.mxu0 0.0
    %224 = vmatpush1.msra.mxu0 0.0
    %225 = vmatprep.subr.mxu0 0.0
    %226 = vmatpush1.msra.mxu0 0.0
    %227 = vmatprep.subr.mxu0 0.0
    %228 = vmatpush1.msra.mxu0 0.0
    %229 = vmatprep.subr.mxu0 0.0
    %230 = vmatpush1.msra.mxu0 0.0
    %231 = vmatprep.subr.mxu0 0.0
    %232 = vmatpush1.msra.mxu0 0.0
    %233 = vmatprep.subr.mxu0 0.0
    %234 = vmatpush1.msra.mxu0 0.0
    %235 = vmatprep.subr.mxu0 0.0
    %236 = vmatpush1.msra.mxu0 0.0
    %237 = vmatprep.subr.mxu0 0.0
    %238 = vmatpush1.msra.mxu0 0.0
    %239 = vmatprep.mubr.f32.mxu0 0.0
    %240 = vmatmul.mubr.f32.gmra.mrb[0].mxu0 %v151
    %v241 = vpop.f32.mrb[0].mxu0
    %v242 = vadd.f32 %v173, %v241
    %v243 = vpop.f32.mrb[0].mxu0
    %244 = vdwg.mxu0
    %v245 = vmax.f32 %v242, 0.0
    %v246 = vld [vmem:[%s5] sm:$0x1]
    %v248 = vlaneseq
    %v249 = vshrl.u32 %v248, 7
    %v250 = vsub.s32 0, %v249
    %v251 = vrot.slane %v246, %v250
    %v253 = vmul.f32 %v245, %v251
    %254 = vadd.xlane.f32.xlu0 %v253
    %v255 = vpop.xlane.xlu0 %254
    %s256 = sld [smem:[#allocation2]]
    %v257 = vstv %s256
    %v258 = vadd.f32 %v255, %v257
    %v260 = vlaneseq
    %v261 = vand.u32 %v260, 127
    %v262 = vlaneseq
    %v263 = vshrl.u32 %v262, 7
    %v264 = vsub.s32 %v261, %v263
    %v265 = vrot.slane %v258, %v264
    %vm267 = vcmask 57344
    %268 = vst.msk [vmem:[#allocation9] sm:$0x1] %vm267, %v265
    // Predicated region
    $region42: #{tpu_custom_call.1} parent=1 // pred_check
      _
    $region43: #{tpu_custom_call.1} parent=1 // pred_check_branch
      %270 = sbr.rel (0) target = $region45
    $region44: #{tpu_custom_call.1} parent=1 // pred_region
      %s272 = ssub.s32 16, 16
      %273 = vsyncadd [#allocation5], %s272
      %s275 = sshll.u32 [#allocation9], 4
      %s276 = int_to_ptr.vmem [resolvable:$true] %s275
      %278 = dma.vmem_to_hbm [thread:$0]  %s276, 16, %s7, [#allocation5]
    $region45: #{tpu_custom_call.1} parent=1 // pred_fallthru
      _
    // Predicated region
    $region46: #{tpu_custom_call.1} parent=1 // pred_check
      _
    $region47: #{tpu_custom_call.1} parent=1 // pred_check_branch
      %280 = sbr.rel (0) target = $region49
    $region48: #{tpu_custom_call.1} parent=1 // pred_region
      %281 = dma.done [#allocation5], 16
    $region49: #{tpu_custom_call.1} parent=1 // pred_fallthru
      _
    %282 = vsyncpa [#allocation4], 1
    %283 = vsyncpa [#allocation7], 1
    %284 = vsyncpa [#allocation5], 1

</llo_original>
